<compile_context>
chip_gen: v5e
topology: v5e:2x2
jax: 0.10.0
libtpu: 0.0.40
codegen_flags: <defaults>
</compile_context>

<pallas_src>
import functools

import jax
import jax.numpy as jnp
from jax import lax
from jax.experimental import pallas as pl
from jax.experimental.pallas import tpu as pltpu


_LANE = 128
_TARGET_BLOCK_BYTES = 2 * 1024 * 1024  # ~2 MiB per DMA block


def _round_up(n, m):
    return -(-n // m) * m


def _choose_tiles(B, C, T, itemsize):
    """Pick (bB, tT) so each DMA block is ~_TARGET_BLOCK_BYTES.

    tT is always a multiple of 128 (lane-dense stores); ragged T is handled by
    Pallas padding/masking the last block.  When one block already covers all
    of T, batch rows are folded into the block instead so small problems do
    not drown in per-grid-step overhead.
    """
    T_pad = _round_up(T, _LANE)
    group_bytes = C * itemsize * _LANE               # bytes per 128-lane column group
    max_groups = max(1, _TARGET_BLOCK_BYTES // group_bytes)
    tT = min(T_pad, max_groups * _LANE)

    bB = 1
    if tT == T_pad:
        block_bytes = C * itemsize * tT
        bB = int(max(1, min(B, _TARGET_BLOCK_BYTES // max(block_bytes, 1))))
        # Keep at least 2 grid steps when possible so v7x's two TensorCores
        # both get work (measured no-op on single-core v5e/v6e).
        if bB >= B and B > 1:
            bB = _round_up(B, 2) // 2
    return bB, tT


def _conv_rmsnorm_kernel(x_ref, g_ref, o_ref, *, eps):
    # x_ref: (bB, C, tT) block, g_ref: (1, C, 1) f32 (sqrt(C) pre-folded).
    x = x_ref[...].astype(jnp.float32)
    # Sum of squares over channels (sublane axis), per time position.
    sumsq = jnp.sum(x * x, axis=1, keepdims=True)             # (bB, 1, tT)
    # 1 / max(||x||, eps) == rsqrt(max(sumsq, eps^2)): matches F.normalize.
    inv = lax.rsqrt(jnp.maximum(sumsq, eps * eps))            # (bB, 1, tT)
    g = g_ref[...]                                            # (1, C, 1)
    o_ref[...] = (x * inv * g).astype(o_ref.dtype)


def conv_rmsnorm(x, gamma, *, eps=1e-12):
    """x: (B, C, T) channels-first (PyTorch conv layout). gamma: (C,)."""
    B, C, T = x.shape
    scale = float(C) ** 0.5
    itemsize = jnp.dtype(x.dtype).itemsize
    bB, tT = _choose_tiles(B, C, T, itemsize)

    # Fold sqrt(C) into gamma (tiny wrapper cost), keep it f32, pre-shaped for
    # direct broadcast against the (bB, C, tT) block.
    g3d = (gamma.astype(jnp.float32) * scale).reshape(1, C, 1)

    kernel = functools.partial(_conv_rmsnorm_kernel, eps=eps)

    return pl.pallas_call(
        kernel,
        out_shape=jax.ShapeDtypeStruct((B, C, T), x.dtype),
        grid_spec=pltpu.PrefetchScalarGridSpec(
            num_scalar_prefetch=0,
            grid=(pl.cdiv(B, bB), pl.cdiv(T, tT)),
            in_specs=[
                pl.BlockSpec((bB, C, tT), lambda b, t: (b, 0, t)),
                pl.BlockSpec((1, C, 1), lambda b, t: (0, 0, 0)),
            ],
            out_specs=pl.BlockSpec((bB, C, tT), lambda b, t: (b, 0, t)),
        ),
        compiler_params=pltpu.CompilerParams(
            dimension_semantics=("parallel", "parallel"),
            vmem_limit_bytes=32 * 1024 * 1024,
        ),
        cost_estimate=pl.CostEstimate(
            flops=4 * B * C * T,
            transcendentals=B * T,
            bytes_accessed=2 * B * C * T * itemsize,
        ),
    )(x, g3d)


def conv_rmsnorm_ref(x, gamma, *, eps=1e-12):
    """Pure-JAX reference mirroring the PyTorch module."""
    B, C, T = x.shape
    scale = float(C) ** 0.5
    y = jnp.transpose(x, (0, 2, 1)).astype(jnp.float32)        # (B, T, C)
    norm = jnp.sqrt(jnp.sum(y * y, axis=-1, keepdims=True))
    y = y / jnp.maximum(norm, eps) * scale * gamma.astype(jnp.float32)
    return jnp.transpose(y, (0, 2, 1)).astype(x.dtype)


if __name__ == "__main__":
    B, C, T = 2, 32, 256                      # batch, channels (=dim), time

    key = jax.random.PRNGKey(0)
    kx, kg = jax.random.split(key)
    x = jax.random.normal(kx, (B, C, T), dtype=jnp.float32)

    # Module init is torch.ones(dim); perturb slightly so the gamma path is
    # actually exercised by the correctness check.
    gamma = jnp.ones((C,), dtype=jnp.float32) + 0.1 * jax.random.normal(
        kg, (C,), dtype=jnp.float32)

    out = conv_rmsnorm(x, gamma)
    out = jax.block_until_ready(out)

    ref = conv_rmsnorm_ref(x, gamma)
    assert out.shape == (B, C, T)
    assert jnp.allclose(out, ref, atol=1e-5, rtol=1e-5)

    print("KERNEL_OK")
</pallas_src>

<mosaic_0001>
module attributes {stable_mosaic.version = 11 : i64} {
  func.func @_conv_rmsnorm_kernel(%arg0: i32, %arg1: i32, %arg2: memref<1x32x256xf32, #tpu.memory_space<vmem>>, %arg3: memref<1x32x1xf32, #tpu.memory_space<vmem>>, %arg4: memref<1x32x256xf32, #tpu.memory_space<vmem>>) attributes {dimension_semantics = [#tpu.dimension_semantics<parallel>, #tpu.dimension_semantics<parallel>], iteration_bounds = array<i64: 2, 1>, scalar_prefetch = 0 : i64, scratch_operands = 0 : i64, tpu.core_type = #tpu.core_type<tc>, window_params = [{transform_indices = @transform_0, window_bounds = array<i64: 1, 32, 256>}, {pipeline_mode = #tpu.pipeline_mode<synchronous>, transform_indices = @transform_1, window_bounds = array<i64: 1, 32, 1>}, {transform_indices = @transform_2, window_bounds = array<i64: 1, 32, 256>}]} {
    %c0 = arith.constant 0 : index
    %c0_0 = arith.constant 0 : index
    %c0_1 = arith.constant 0 : index
    %0 = vector.load %arg2[%c0, %c0_0, %c0_1] : memref<1x32x256xf32, #tpu.memory_space<vmem>>, vector<1x32x256xf32>
    %1 = arith.mulf %0, %0 : vector<1x32x256xf32>
    %cst = arith.constant dense<0.000000e+00> : vector<1x256xf32>
    %2 = vector.multi_reduction <add>, %1, %cst [1] : vector<1x32x256xf32> to vector<1x256xf32>
    %3 = vector.shape_cast %2 : vector<1x256xf32> to vector<1x1x256xf32>
    %cst_2 = arith.constant 1.000000e-24 : f32
    %4 = vector.broadcast %cst_2 : f32 to vector<1x1x256xf32>
    %5 = arith.maximumf %3, %4 : vector<1x1x256xf32>
    %6 = math.rsqrt %5 : vector<1x1x256xf32>
    %c0_3 = arith.constant 0 : index
    %c0_4 = arith.constant 0 : index
    %c0_5 = arith.constant 0 : index
    %7 = vector.load %arg3[%c0_3, %c0_4, %c0_5] : memref<1x32x1xf32, #tpu.memory_space<vmem>>, vector<1x32x1xf32>
    %8 = vector.broadcast %6 : vector<1x1x256xf32> to vector<1x32x256xf32>
    %9 = arith.mulf %0, %8 : vector<1x32x256xf32>
    %10 = vector.broadcast %7 : vector<1x32x1xf32> to vector<1x32x256xf32>
    %11 = arith.mulf %9, %10 : vector<1x32x256xf32>
    %c0_6 = arith.constant 0 : index
    %c0_7 = arith.constant 0 : index
    %c0_8 = arith.constant 0 : index
    %12 = vector.load %arg4[%c0_6, %c0_7, %c0_8] : memref<1x32x256xf32, #tpu.memory_space<vmem>>, vector<1x32x256xf32>
    tpu.vector_store %arg4[%c0_6, %c0_7, %c0_8], %11 {strides = array<i32>} : memref<1x32x256xf32, #tpu.memory_space<vmem>>, vector<1x32x256xf32>,
    return
  }
  func.func @transform_0(%arg0: i32, %arg1: i32) -> (i32, i32, i32) {
    %c0_i32 = arith.constant 0 : i32
    %c0_i32_0 = arith.constant 0 : i32
    return %arg0, %c0_i32, %arg1 : i32, i32, i32
  }
  func.func @transform_1(%arg0: i32, %arg1: i32) -> (i32, i32, i32) {
    %c0_i32 = arith.constant 0 : i32
    %c0_i32_0 = arith.constant 0 : i32
    %c0_i32_1 = arith.constant 0 : i32
    %c0_i32_2 = arith.constant 0 : i32
    return %c0_i32, %c0_i32_0, %c0_i32_1 : i32, i32, i32
  }
  func.func @transform_2(%arg0: i32, %arg1: i32) -> (i32, i32, i32) {
    %c0_i32 = arith.constant 0 : i32
    %c0_i32_0 = arith.constant 0 : i32
    return %arg0, %c0_i32, %arg1 : i32, i32, i32
  }
}

</mosaic_0001>

<llo_original>
// kernel: tpu_custom_call.1
$region0: #{tpu_custom_call.1}
  #allocation0 [shape = 'u32[]', space=smem, size = 0x4, offset = 0x4, fixed_abs, tag = 'smem constant byte address 0x4 - core index']
  #allocation1 [shape = 'u32[72,128]{1,0:T(1,128)}', space=vmem, size = 0x9000, scoped, tag = 'internal scratch']
  %s0 = inlined_call_operand.hbm [shape: f32[2,32,256], index: 0, kind: input, shape index: {}]
  %s1 = inlined_call_operand.vmem [shape: f32[1,32,1], index: 1, kind: input, shape index: {}]
  %s2 = inlined_call_operand.hbm [shape: f32[2,32,256], index: 2, kind: output, shape index: {}]
  %s3 = sld [smem:[#allocation0]]
  $region45: #{tpu_custom_call.1} parent=0
    _
  %s5 = ssub.s32 1, %s3
  %s6 = scalar_select 0, %s5, %s3
  $region1: #{tpu_custom_call.1} parent=0
    #allocation2 [shape = 'u8[65536]{0}', space=vmem, size = 0x10000, scoped, tag = 'input window, operand 0']
    #allocation3 [shape = 's32[2]{0}', space=sflag, size = 0x8, scoped, tag = 'scoped memory for tpu_custom_call.1']
    #allocation4 [shape = 's32[2]{0}', space=sflag, size = 0x8, scoped, tag = 'scoped memory for tpu_custom_call.1']
    #allocation5 [shape = 'u8[65536]{0}', space=vmem, size = 0x10000, scoped, tag = 'output window, operand 0']
    %7 = vsyncpa [#allocation3], 0
    %s8 = scalar_lea.sflag [#allocation3], 1
    %9 = vsyncpa %s8, 0
    %10 = vsyncpa [#allocation4], 0
    %s11 = scalar_lea.sflag [#allocation4], 1
    %12 = vsyncpa %s11, 0
    loop: start=0, step=1, limit=4
    $region2: #{tpu_custom_call.1} parent=1 // loop_pre_header
      _
    $region3: #{tpu_custom_call.1} parent=1 // loop_header
      %s14 = sphi 0, %s18
      %p15 = scmp.ge.s32.totalorder %s14, 4
      %s21 = sphi 0, %s33
      %s22 = sphi 0, %s29
      %s23 = sphi 0, %s21
      %s24 = sphi 0, %s22
      %s25 = sphi 0, %s23
      %s26 = sphi 0, %s24
      %s38 = sphi 0, %s40
      %s41 = sphi 0, %s38
      %s42 = sphi 0, %s41
      %s58 = sphi 0, %s42
      %s62 = sphi 0, %s62
      %s64 = sphi 0, %s62
      %s65 = sphi 0, %s64
      %s79 = sphi 0, %s65
      %s87 = sphi 0, %s89
      %s90 = sphi 0, %s87
      %s91 = sphi 0, %s90
      %s107 = sphi 0, %s91
    $region4: #{tpu_custom_call.1} parent=1 // loop_header_branch
      %17 = sbr.rel (%p15) target = $region8
    $region5: #{tpu_custom_call.1} parent=1 // loop_body
      %s19 = ssub.s32 %s14, 1
      %s20 = ssub.s32 %s14, 2
      %s27 = sadd.s32 1, %s22
      %p28 = scmp.ge.s32.totalorder %s27, 1
      %s29 = scalar_select %p28, 0, %s27
      %s30 = sadd.s32 1, %s21
      %s31 = scalar_select %p28, %s30, %s21
      %p32 = scmp.ge.s32.totalorder %s31, 2
      %s33 = scalar_select %p32, 0, %s31
      %s34 = ssub.s32 %s21, %s33
      %s35 = ssub.s32 %s22, %s29
      %s36 = sor.u32 %s34, %s35
      %p37 = scmp.eq.s32.totalorder %s36, 0
      %s39 = sadd.s32 %s38, 1
      %s40 = scalar_select %p37, %s38, %s39
      %p43 = pneg %p37
      %p44 = scmp.eq.s32.totalorder %s14, 1
      %p45 = por %p43, %p44
      %p46 = scmp.ne.s32.totalorder %s38, %s41
      %p47 = scmp.eq.s32.totalorder %s14, 0
      %p48 = por %p46, %p47
      %p49 = scmp.ne.s32.totalorder %s38, %s41
      %p50 = scmp.eq.s32.totalorder %s19, 1
      %p51 = por %p49, %p50
      %p52 = scmp.ne.s32.totalorder %s41, %s42
      %p53 = scmp.eq.s32.totalorder %s19, 0
      %p54 = por %p52, %p53
      %p55 = scmp.ne.s32.totalorder %s41, %s42
      %p56 = scmp.eq.s32.totalorder %s20, 1
      %p57 = por %p55, %p56
      %p59 = scmp.ne.s32.totalorder %s42, %s58
      %p60 = scmp.eq.s32.totalorder %s20, 0
      %p61 = por %p59, %p60
      %s63 = sadd.s32 %s62, 1
      %p66 = scmp.eq.s32.totalorder %s14, 1
      %p67 = scmp.ne.s32.totalorder %s62, %s64
      %p68 = scmp.eq.s32.totalorder %s14, 0
      %p69 = por %p67, %p68
      %p70 = scmp.ne.s32.totalorder %s62, %s64
      %p71 = scmp.eq.s32.totalorder %s19, 1
      %p72 = por %p70, %p71
      %p73 = scmp.ne.s32.totalorder %s64, %s65
      %p74 = scmp.eq.s32.totalorder %s19, 0
      %p75 = por %p73, %p74
      %p76 = scmp.ne.s32.totalorder %s64, %s65
      %p77 = scmp.eq.s32.totalorder %s20, 1
      %p78 = por %p76, %p77
      %p80 = scmp.ne.s32.totalorder %s65, %s79
      %p81 = scmp.eq.s32.totalorder %s20, 0
      %p82 = por %p80, %p81
      %s83 = ssub.s32 %s21, %s33
      %s84 = ssub.s32 %s22, %s29
      %s85 = sor.u32 %s83, %s84
      %p86 = scmp.eq.s32.totalorder %s85, 0
      %s88 = sadd.s32 %s87, 1
      %s89 = scalar_select %p86, %s87, %s88
      %p92 = pneg %p86
      %p93 = scmp.eq.s32.totalorder %s14, 1
      %p94 = por %p92, %p93
      %p95 = scmp.ne.s32.totalorder %s87, %s90
      %p96 = scmp.eq.s32.totalorder %s14, 0
      %p97 = por %p95, %p96
      %p98 = scmp.ne.s32.totalorder %s87, %s90
      %p99 = scmp.eq.s32.totalorder %s19, 1
      %p100 = por %p98, %p99
      %p101 = scmp.ne.s32.totalorder %s90, %s91
      %p102 = scmp.eq.s32.totalorder %s19, 0
      %p103 = por %p101, %p102
      %p104 = scmp.ne.s32.totalorder %s90, %s91
      %p105 = scmp.eq.s32.totalorder %s20, 1
      %p106 = por %p104, %p105
      %p108 = scmp.ne.s32.totalorder %s91, %s107
      %p109 = scmp.eq.s32.totalorder %s20, 0
      %p110 = por %p108, %p109
      %p111 = scmp.le.s32.totalorder 1, %s14
      %p112 = scmp.lt.s32.totalorder %s14, 3
      %p113 = pnand %p111, %p112
      %p114 = pneg %p113
      // Predicated region
      $region9: #{tpu_custom_call.1} parent=5 // pred_check
        _
      $region10: #{tpu_custom_call.1} parent=5 // pred_check_branch
        %116 = sbr.rel (%p113) target = $region12
      $region11: #{tpu_custom_call.1} parent=5 // pred_region
        %s117 = ssub.s32 %s14, 1
        // Predicated region
        $region13: #{tpu_custom_call.1} parent=11 // pred_check
          %p118 = pneg %p75
        $region14: #{tpu_custom_call.1} parent=11 // pred_check_branch
          %120 = sbr.rel (%p118) target = $region16
        $region15: #{tpu_custom_call.1} parent=11 // pred_region
          _
        $region16: #{tpu_custom_call.1} parent=11 // pred_fallthru
          _
      $region12: #{tpu_custom_call.1} parent=5 // pred_fallthru
        _
      %p121 = scmp.lt.s32.totalorder %s14, 2
      // Predicated region
      $region17: #{tpu_custom_call.1} parent=5 // pred_check
        %p122 = pneg %p121
      $region18: #{tpu_custom_call.1} parent=5 // pred_check_branch
        %124 = sbr.rel (%p122) target = $region20
      $region19: #{tpu_custom_call.1} parent=5 // pred_region
        // Predicated region
        $region21: #{tpu_custom_call.1} parent=19 // pred_check
          %p125 = pneg %p48
        $region22: #{tpu_custom_call.1} parent=19 // pred_check_branch
          %127 = sbr.rel (%p125) target = $region24
        $region23: #{tpu_custom_call.1} parent=19 // pred_region
          %s128 = sand.u32 %s38, 1
          %s129 = scalar_lea.sflag [#allocation3], %s128
          %s130 = sand.u32 %s38, 1
          %s131 = smul.addr %s130, 64
          %s132 = scalar_lea.vmem [#allocation2], %s131
          %s133 = smul.u32 2, %s22
          %135 = vsyncadd %s129, 0
          %s136 = smul.addr %s21, 8
          %s137 = sadd.s32 %s133, %s136
          %s138 = smul.addr %s137, 8
          %s139 = scalar_lea.hbm %s0, %s138
          %s140 = sshll.u32 %s139, 4
          %s141 = int_to_ptr.hbm [resolvable:$true] %s140
          %s142 = sshll.u32 %s132, 4
          %s143 = int_to_ptr.vmem [resolvable:$true] %s142
          %148 = dma.hbm_to_vmem [thread:$0]  %s141, 1024, %s143, %s129, 256, 256, 16
        $region24: #{tpu_custom_call.1} parent=19 // pred_fallthru
          _
      $region20: #{tpu_custom_call.1} parent=5 // pred_fallthru
        _
      %p149 = scmp.le.s32.totalorder 1, %s14
      %p150 = scmp.lt.s32.totalorder %s14, 3
      %p151 = pnand %p149, %p150
      %p152 = pneg %p151
      // Predicated region
      $region25: #{tpu_custom_call.1} parent=5 // pred_check
        _
      $region26: #{tpu_custom_call.1} parent=5 // pred_check_branch
        %154 = sbr.rel (%p151) target = $region28
      $region27: #{tpu_custom_call.1} parent=5 // pred_region
        %s155 = ssub.s32 %s14, 1
        %s156 = sand.u32 %s41, 1
        %s157 = scalar_lea.sflag [#allocation3], %s156
        %s158 = sand.u32 %s41, 1
        %s159 = smul.addr %s158, 64
        %s160 = scalar_lea.vmem [#allocation2], %s159
        // Predicated region
        $region29: #{tpu_custom_call.1} parent=27 // pred_check
          %p161 = pneg %p54
        $region30: #{tpu_custom_call.1} parent=27 // pred_check_branch
          %163 = sbr.rel (%p161) target = $region32
        $region31: #{tpu_custom_call.1} parent=27 // pred_region
          %165 = dma.done %s157, 1024
        $region32: #{tpu_custom_call.1} parent=27 // pred_fallthru
          _
        %s166 = sand.u32 %s41, 1
        %s167 = scalar_lea.sflag [#allocation3], %s166
        %s168 = sand.u32 %s41, 1
        %s169 = smul.addr %s168, 64
        %s170 = scalar_lea.vmem [#allocation2], %s169
        %p171 = pneg %p54
        %p172 = pneg %p51
        %p173 = pneg %p75
        %p174 = pneg %p72
        %p175 = pneg %p103
        %p176 = pneg %p100
        %s177 = sand.u32 %s90, 1
        %s178 = scalar_lea.sflag [#allocation4], %s177
        %s179 = sand.u32 %s90, 1
        %s180 = smul.addr %s179, 64
        %s181 = scalar_lea.vmem [#allocation5], %s180
        %s182 = smul.u32 2, %s24
        %s183 = smul.u32 2, %s24
        %v184 = vld [vmem:[%s160] sm:$0xff]
        %v185 = vld [vmem:[%s160 + $0x8] sm:$0xff]
        %v186 = vld [vmem:[%s160 + $0x10] sm:$0xff]
        %v187 = vld [vmem:[%s160 + $0x18] sm:$0xff]
        %v188 = vld [vmem:[%s160 + $0x20] sm:$0xff]
        %v189 = vld [vmem:[%s160 + $0x28] sm:$0xff]
        %v190 = vld [vmem:[%s160 + $0x30] sm:$0xff]
        %v191 = vld [vmem:[%s160 + $0x38] sm:$0xff]
        %v192 = vmul.f32 %v184, %v184
        %v193 = vmul.f32 %v185, %v185
        %v194 = vmul.f32 %v186, %v186
        %v195 = vmul.f32 %v187, %v187
        %v196 = vmul.f32 %v188, %v188
        %v197 = vmul.f32 %v189, %v189
        %v198 = vmul.f32 %v190, %v190
        %v199 = vmul.f32 %v191, %v191
        %v200 = vadd.f32 %v192, %v194
        %v201 = vadd.f32 %v200, %v196
        %v202 = vadd.f32 %v201, %v198
        %v203 = vrot.slane %v202, 4
        %v204 = vadd.f32 %v202, %v203
        %v205 = vrot.slane %v204, 2
        %v206 = vadd.f32 %v204, %v205
        %v207 = vrot.slane %v206, 1
        %v208 = vadd.f32 %v206, %v207
        %v209 = vadd.f32 %v193, %v195
        %v210 = vadd.f32 %v209, %v197
        %v211 = vadd.f32 %v210, %v199
        %v212 = vrot.slane %v211, 4
        %v213 = vadd.f32 %v211, %v212
        %v214 = vrot.slane %v213, 2
        %v215 = vadd.f32 %v213, %v214
        %v216 = vrot.slane %v215, 1
        %v217 = vadd.f32 %v215, %v216
        %v218 = vmax.f32 %v208, 1e-24
        %v219 = vmax.f32 %v217, 1e-24
        %v220 = vrsqrt.pop %v218
        %v221 = vmul.f32 %v220, %v218
        %v222 = vmul.f32 %v221, %v220
        %v223 = vmul.f32 0.5, %v222
        %v224 = vsub.f32 1.5, %v223
        %v225 = vmul.f32 %v220, %v224
        %vm226 = vweird.f32 %v218
        %vm227 = vweird.f32 %v220
        %vm228 = vmor %vm226, %vm227
        %v229 = vsel %vm228, %v220, %v225
        %v230 = vrsqrt.pop %v219
        %v231 = vmul.f32 %v230, %v219
        %v232 = vmul.f32 %v231, %v230
        %v233 = vmul.f32 0.5, %v232
        %v234 = vsub.f32 1.5, %v233
        %v235 = vmul.f32 %v230, %v234
        %vm236 = vweird.f32 %v219
        %vm237 = vweird.f32 %v230
        %vm238 = vmor %vm236, %vm237
        %v239 = vsel %vm238, %v230, %v235
        %v240 = vld [vmem:[%s1] sm:$0xff]
        %v241 = vld [vmem:[%s1 + $0x8] sm:$0xff]
        %v242 = vld [vmem:[%s1 + $0x10] sm:$0xff]
        %v243 = vld [vmem:[%s1 + $0x18] sm:$0xff]
        %v244 = vmul.f32 %v184, %v229
        %v245 = vmul.f32 %v185, %v239
        %v246 = vmul.f32 %v186, %v229
        %v247 = vmul.f32 %v187, %v239
        %v248 = vmul.f32 %v188, %v229
        %v249 = vmul.f32 %v189, %v239
        %v250 = vmul.f32 %v190, %v229
        %v251 = vmul.f32 %v191, %v239
        %253 = vset.pattern.permute.xlu0 0
        %254 = vperm.xlu0 %253, %v240
        %v255 = vpop.permute.xlu0 %254
        %258 = vset.pattern.permute.xlu0 0
        %259 = vperm.xlu0 %258, %v241
        %v260 = vpop.permute.xlu0 %259
        %263 = vset.pattern.permute.xlu0 0
        %264 = vperm.xlu0 %263, %v242
        %v265 = vpop.permute.xlu0 %264
        %268 = vset.pattern.permute.xlu0 0
        %269 = vperm.xlu0 %268, %v243
        %v270 = vpop.permute.xlu0 %269
        %v272 = vmul.f32 %v244, %v255
        %v273 = vmul.f32 %v245, %v255
        %v274 = vmul.f32 %v246, %v260
        %v275 = vmul.f32 %v247, %v260
        %v276 = vmul.f32 %v248, %v265
        %v277 = vmul.f32 %v249, %v265
        %v278 = vmul.f32 %v250, %v270
        %v279 = vmul.f32 %v251, %v270
        %280 = vst [vmem:[%s181] sm:$0xff] %v272
        %281 = vst [vmem:[%s181 + $0x8] sm:$0xff] %v273
        %282 = vst [vmem:[%s181 + $0x10] sm:$0xff] %v274
        %283 = vst [vmem:[%s181 + $0x18] sm:$0xff] %v275
        %284 = vst [vmem:[%s181 + $0x20] sm:$0xff] %v276
        %285 = vst [vmem:[%s181 + $0x28] sm:$0xff] %v277
        %286 = vst [vmem:[%s181 + $0x30] sm:$0xff] %v278
        %287 = vst [vmem:[%s181 + $0x38] sm:$0xff] %v279
        %s288 = sand.u32 %s90, 1
        %s289 = scalar_lea.sflag [#allocation4], %s288
        %s290 = sand.u32 %s90, 1
        %s291 = smul.addr %s290, 64
        %s292 = scalar_lea.vmem [#allocation5], %s291
        // Predicated region
        $region33: #{tpu_custom_call.1} parent=27 // pred_check
          %p293 = pneg %p100
        $region34: #{tpu_custom_call.1} parent=27 // pred_check_branch
          %295 = sbr.rel (%p293) target = $region36
        $region35: #{tpu_custom_call.1} parent=27 // pred_region
          %s296 = smul.u32 2, %s24
          %298 = vsyncadd %s289, 0
          %s299 = smul.addr %s23, 8
          %s300 = sadd.s32 %s296, %s299
          %s301 = smul.addr %s300, 8
          %s302 = scalar_lea.hbm %s2, %s301
          %s303 = sshll.u32 %s292, 4
          %s304 = int_to_ptr.vmem [resolvable:$true] %s303
          %s305 = sshll.u32 %s302, 4
          %s306 = int_to_ptr.hbm [resolvable:$true] %s305
          %311 = dma.vmem_to_hbm [thread:$0]  %s304, 1024, %s306, %s289, 256, 256, 16
        $region36: #{tpu_custom_call.1} parent=27 // pred_fallthru
          _
      $region28: #{tpu_custom_call.1} parent=5 // pred_fallthru
        _
      %p312 = scmp.le.s32.totalorder 2, %s14
      // Predicated region
      $region37: #{tpu_custom_call.1} parent=5 // pred_check
        %p313 = pneg %p312
      $region38: #{tpu_custom_call.1} parent=5 // pred_check_branch
        %315 = sbr.rel (%p313) target = $region40
      $region39: #{tpu_custom_call.1} parent=5 // pred_region
        %s316 = ssub.s32 %s14, 2
        // Predicated region
        $region41: #{tpu_custom_call.1} parent=39 // pred_check
          %p317 = pneg %p106
        $region42: #{tpu_custom_call.1} parent=39 // pred_check_branch
          %319 = sbr.rel (%p317) target = $region44
        $region43: #{tpu_custom_call.1} parent=39 // pred_region
          %s320 = sand.u32 %s91, 1
          %s321 = scalar_lea.sflag [#allocation4], %s320
          %s322 = sand.u32 %s91, 1
          %s323 = smul.addr %s322, 64
          %s324 = scalar_lea.vmem [#allocation5], %s323
          %326 = dma.done %s321, 1024
        $region44: #{tpu_custom_call.1} parent=39 // pred_fallthru
          _
      $region40: #{tpu_custom_call.1} parent=5 // pred_fallthru
        _
    $region6: #{tpu_custom_call.1} parent=1 // loop_footer
      %s18 = sadd.s32 1, %s14
    $region7: #{tpu_custom_call.1} parent=1 // loop_footer_branch
      %13 = sbr.rel target = $region3
    $region8: #{tpu_custom_call.1} parent=1 // loop_exit
      _
    %327 = vsyncpa [#allocation3], 1
    %s328 = scalar_lea.sflag [#allocation3], 1
    %329 = vsyncpa %s328, 1
    %330 = vsyncpa [#allocation4], 1
    %s331 = scalar_lea.sflag [#allocation4], 1
    %332 = vsyncpa %s331, 1

</llo_original>
